<compile_context>
chip_gen: v5e
topology: v5e:2x2
jax: 0.10.0
libtpu: 0.0.40
codegen_flags: <defaults>
</compile_context>

<pallas_src>
import jax
import jax.numpy as jnp
from jax import lax
from jax.experimental import pallas as pl
from jax.experimental.pallas import tpu as pltpu


def _cdiv(a, b):
    return -(-a // b)


def _round_up(a, b):
    return _cdiv(a, b) * b


def _make_kernel(kernel_sizes, tl, tr, n_red, compute_dtype):
    """Fused multi-pool banded matmul kernel (closes over static config)."""

    def kernel(x_ref, o_ref, acc_ref):
        t_blk = pl.program_id(0)
        kr = pl.program_id(2)

        @pl.when(kr == 0)
        def _init():
            acc_ref[...] = jnp.zeros_like(acc_ref)

        # Reduction step kr walks backwards from the current time tile:
        # s_blk = t_blk - kr.  Steps that would fall before the start of the
        # sequence are skipped (their index_map clamps to block 0; computing
        # them would double-count block 0).
        @pl.when(kr <= t_blk)
        def _compute():
            t0 = t_blk * tl
            s0 = (t_blk - kr) * tl
            x_tile = x_ref[...].astype(compute_dtype)            # (tl, tr)
            t_gl = t0 + lax.broadcasted_iota(jnp.int32, (tl, tl), 0)
            s_gl = s0 + lax.broadcasted_iota(jnp.int32, (tl, tl), 1)

            for i, k in enumerate(kernel_sizes):
                def accum(i=i, k=k):
                    # Causal window of length k ending at t, with the
                    # replicate-left-pad folded into column s == 0.
                    in_band = (s_gl > t_gl - k) & (s_gl <= t_gl)
                    pad_cnt = jnp.where(
                        s_gl == 0, jnp.maximum((k - 1) - t_gl, 0), 0)
                    w = (in_band.astype(jnp.float32)
                         + pad_cnt.astype(jnp.float32)) * (1.0 / k)
                    acc_ref[i, :, :] = acc_ref[i, :, :] + jnp.dot(
                        w.astype(compute_dtype), x_tile,
                        preferred_element_type=jnp.float32)

                # Smaller pools reach back fewer reduction tiles; skip steps
                # that are outside their band (perf only -- the generated
                # weights there would be all zero).
                n_red_i = 1 + _cdiv(k - 1, tl)
                if n_red_i >= n_red:
                    accum()
                else:
                    pl.when(kr < n_red_i)(accum)

        @pl.when(kr == n_red - 1)
        def _store():
            o_ref[...] = acc_ref[...].astype(o_ref.dtype)

    return kernel


def avg_pools(x, min_kernel_size, kernelnum, expand=4, *,
              compute_dtype=jnp.bfloat16, tl_max=256, tr_max=256):
    """Pallas equivalent of AvgPools.forward.  x: (L, N, C) -> (L, N, K*C)."""
    L, N, C = x.shape
    R = N * C
    kernel_sizes = [min_kernel_size * expand ** i for i in range(kernelnum)]
    k_max = kernel_sizes[-1]

    # Tile sizes: lane dim (R) a multiple of 128, time/reduction tile a
    # multiple of 8.  Defaults of 256 keep the MXU 256-aligned on v6e/v7x
    # while staying a few MiB of VMEM even double-buffered (v7x-safe).
    tl = min(tl_max, _round_up(L, 8))
    tr = min(tr_max, _round_up(R, 128))
    Lp = _round_up(L, tl)
    Rp = _round_up(R, tr)
    n_t = Lp // tl
    n_r = Rp // tr
    # Banded reduction: a time tile only needs x rows in [t - k_max + 1, t].
    n_red = min(n_t, 1 + _cdiv(k_max - 1, tl))

    # (L, N, C) -> (L, R) is a free reshape (time already leading); cast to
    # the MXU compute dtype before the kernel so DMA/VMEM bytes are halved
    # on the bf16 path.  Zero-pad to tile multiples (padding never leaks into
    # valid outputs: the causal band only touches s <= t < L).
    x2 = x.reshape(L, R)
    if x2.dtype != compute_dtype:
        x2 = x2.astype(compute_dtype)
    x2 = jnp.pad(x2, ((0, Lp - L), (0, Rp - R)))

    kernel = _make_kernel(tuple(kernel_sizes), tl, tr, n_red, compute_dtype)

    flops = 2 * kernelnum * n_t * n_r * n_red * tl * tl * tr
    bytes_accessed = (
        n_t * n_r * n_red * tl * tr * jnp.dtype(compute_dtype).itemsize
        + kernelnum * Lp * Rp * jnp.dtype(x.dtype).itemsize)

    out3 = pl.pallas_call(
        kernel,
        out_shape=jax.ShapeDtypeStruct((kernelnum, Lp, Rp), x.dtype),
        grid_spec=pltpu.PrefetchScalarGridSpec(
            num_scalar_prefetch=0,
            grid=(n_t, n_r, n_red),
            in_specs=[pl.BlockSpec(
                (tl, tr), lambda t, r, kr: (jnp.maximum(t - kr, 0), r))],
            out_specs=pl.BlockSpec(
                (kernelnum, tl, tr), lambda t, r, kr: (0, t, r)),
            scratch_shapes=[pltpu.VMEM((kernelnum, tl, tr), jnp.float32)],
        ),
        compiler_params=pltpu.CompilerParams(
            dimension_semantics=("parallel", "parallel", "arbitrary"),
            vmem_limit_bytes=32 * 1024 * 1024),
        cost_estimate=pl.CostEstimate(
            flops=int(flops), transcendentals=0,
            bytes_accessed=int(bytes_accessed)),
    )(x2)

    # Kernel-native layout is (K, L, N*C) (lane-dense on N*C).  The transpose
    # below is layout glue for API parity with the PyTorch module.
    # TODO(synk): downstream consumers could take (K, L, N, C) directly and
    # skip this extra HBM pass.
    out = out3[:, :L, :R].reshape(kernelnum, L, N, C)
    out = jnp.transpose(out, (1, 2, 0, 3)).reshape(L, N, kernelnum * C)
    return out


def _ref_avg_pools(x, min_kernel_size, kernelnum, expand=4):
    """Pure-JAX reference that mirrors the PyTorch forward line by line."""
    L, N, C = x.shape
    kernel_sizes = [min_kernel_size * expand ** i for i in range(kernelnum)]
    M = kernel_sizes[-1]
    xp = jnp.transpose(x, (1, 2, 0))                                     # (N, C, L)
    xp = jnp.concatenate([jnp.repeat(xp[:, :, 0:1], M, axis=2), xp], axis=2)
    outs = []
    for k in kernel_sizes:
        seg = xp[:, :, xp.shape[2] - (L + k - 1):]
        pooled = jnp.stack(
            [seg[:, :, s:s + k].mean(axis=2) for s in range(L)], axis=2)  # (N, C, L)
        outs.append(pooled)
    outs = jnp.concatenate(outs, axis=1)                                  # (N, C*K, L)
    return jnp.transpose(outs, (2, 0, 1))                                 # (L, N, C*K)


if __name__ == "__main__":
    min_kernel_size, kernelnum, expand = 2, 2, 4      # kernel sizes: [2, 8]
    L, N, C = 16, 2, 4
    x = jax.random.normal(jax.random.PRNGKey(0), (L, N, C), dtype=jnp.float32)

    ref = _ref_avg_pools(x, min_kernel_size, kernelnum, expand)

    # Exact f32 MXU path.
    out = jax.block_until_ready(
        avg_pools(x, min_kernel_size, kernelnum, expand,
                  compute_dtype=jnp.float32))
    assert out.shape == (L, N, kernelnum * C), out.shape
    assert jnp.allclose(out, ref, atol=1e-5, rtol=1e-5), float(
        jnp.max(jnp.abs(out - ref)))

    # Default bf16 MXU path (f32 accumulation; 1/k exact for power-of-two k).
    out_bf = jax.block_until_ready(
        avg_pools(x, min_kernel_size, kernelnum, expand))
    assert jnp.allclose(out_bf, ref, atol=3e-2, rtol=3e-2), float(
        jnp.max(jnp.abs(out_bf - ref)))

    # Multi-tile / banded-reduction path: small forced tiles exercise the
    # grid, accumulator, band-skip and padding logic at toy sizes.
    min2, knum2 = 2, 3                                # kernel sizes: [2, 8, 32]
    L2, N2, C2 = 48, 3, 5
    x2 = jax.random.normal(jax.random.PRNGKey(1), (L2, N2, C2), jnp.float32)
    ref2 = _ref_avg_pools(x2, min2, knum2, expand)
    out2 = jax.block_until_ready(
        avg_pools(x2, min2, knum2, expand, compute_dtype=jnp.float32,
                  tl_max=16, tr_max=128))
    assert out2.shape == (L2, N2, knum2 * C2), out2.shape
    assert jnp.allclose(out2, ref2, atol=1e-5, rtol=1e-5), float(
        jnp.max(jnp.abs(out2 - ref2)))

    print("KERNEL_OK")
</pallas_src>

<mosaic_0001>
module attributes {stable_mosaic.version = 11 : i64} {
  func.func @kernel(%arg0: i32, %arg1: i32, %arg2: i32, %arg3: memref<16x128xf32, #tpu.memory_space<vmem>>, %arg4: memref<2x16x128xf32, #tpu.memory_space<vmem>>, %arg5: memref<2x16x128xf32, #tpu.memory_space<vmem>>) attributes {dimension_semantics = [#tpu.dimension_semantics<parallel>, #tpu.dimension_semantics<parallel>, #tpu.dimension_semantics<arbitrary>], iteration_bounds = array<i64: 1, 1, 1>, scalar_prefetch = 0 : i64, scratch_operands = 1 : i64, tpu.core_type = #tpu.core_type<tc>, window_params = [{transform_indices = @transform_0, window_bounds = array<i64: 16, 128>}, {transform_indices = @transform_1, window_bounds = array<i64: 2, 16, 128>}]} {
    %c0_i32 = arith.constant 0 : i32
    %0 = arith.cmpi eq, %arg2, %c0_i32 : i32
    %1 = arith.extui %0 : i1 to i32
    %c0_i32_0 = arith.constant 0 : i32
    %2 = arith.cmpi ne, %1, %c0_i32_0 : i32
    scf.if %2 {
      %cst = arith.constant 0.000000e+00 : f32
      %9 = vector.broadcast %cst : f32 to vector<2x16x128xf32>
      %c0 = arith.constant 0 : index
      %c0_4 = arith.constant 0 : index
      %c0_5 = arith.constant 0 : index
      %10 = vector.load %arg5[%c0, %c0_4, %c0_5] : memref<2x16x128xf32, #tpu.memory_space<vmem>>, vector<2x16x128xf32>
      tpu.vector_store %arg5[%c0, %c0_4, %c0_5], %9 {strides = array<i32>} : memref<2x16x128xf32, #tpu.memory_space<vmem>>, vector<2x16x128xf32>,
    } else {
    }
    %3 = arith.cmpi sle, %arg2, %arg0 : i32
    %4 = arith.extui %3 : i1 to i32
    %c0_i32_1 = arith.constant 0 : i32
    %5 = arith.cmpi ne, %4, %c0_i32_1 : i32
    scf.if %5 {
      %c16_i32 = arith.constant 16 : i32
      %9 = arith.muli %arg0, %c16_i32 : i32
      %10 = arith.subi %arg0, %arg2 : i32
      %c16_i32_4 = arith.constant 16 : i32
      %11 = arith.muli %10, %c16_i32_4 : i32
      %c0 = arith.constant 0 : index
      %c0_5 = arith.constant 0 : index
      %12 = vector.load %arg3[%c0, %c0_5] : memref<16x128xf32, #tpu.memory_space<vmem>>, vector<16x128xf32>
      %13 = tpu.iota {dimensions = array<i32: 0>} : vector<16x16xi32>
      %14 = vector.broadcast %9 : i32 to vector<16x16xi32>
      %15 = arith.addi %14, %13 : vector<16x16xi32>
      %16 = tpu.iota {dimensions = array<i32: 1>} : vector<16x16xi32>
      %17 = vector.broadcast %11 : i32 to vector<16x16xi32>
      %18 = arith.addi %17, %16 : vector<16x16xi32>
      %c2_i32 = arith.constant 2 : i32
      %19 = vector.broadcast %c2_i32 : i32 to vector<16x16xi32>
      %20 = arith.subi %15, %19 : vector<16x16xi32>
      %21 = arith.cmpi sgt, %18, %20 : vector<16x16xi32>
      %22 = arith.cmpi sle, %18, %15 : vector<16x16xi32>
      %23 = arith.andi %21, %22 : vector<16x16xi1>
      %c0_i32_6 = arith.constant 0 : i32
      %24 = vector.broadcast %c0_i32_6 : i32 to vector<16x16xi32>
      %25 = arith.cmpi eq, %18, %24 : vector<16x16xi32>
      %c1_i32 = arith.constant 1 : i32
      %26 = vector.broadcast %c1_i32 : i32 to vector<16x16xi32>
      %27 = arith.subi %26, %15 : vector<16x16xi32>
      %c0_i32_7 = arith.constant 0 : i32
      %28 = vector.broadcast %c0_i32_7 : i32 to vector<16x16xi32>
      %29 = arith.maxsi %27, %28 : vector<16x16xi32>
      %c0_i32_8 = arith.constant 0 : i32
      %30 = vector.broadcast %c0_i32_8 : i32 to vector<16x16xi32>
      %31 = arith.select %25, %29, %30 : vector<16x16xi1>, vector<16x16xi32>
      %32 = arith.extui %23 : vector<16x16xi1> to vector<16x16xi32>
      %33 = arith.sitofp %32 : vector<16x16xi32> to vector<16x16xf32>
      %34 = arith.sitofp %31 : vector<16x16xi32> to vector<16x16xf32>
      %35 = arith.addf %33, %34 : vector<16x16xf32>
      %cst = arith.constant 5.000000e-01 : f32
      %36 = vector.broadcast %cst : f32 to vector<16x16xf32>
      %37 = arith.mulf %35, %36 : vector<16x16xf32>
      %c0_9 = arith.constant 0 : index
      %c0_10 = arith.constant 0 : index
      %c0_11 = arith.constant 0 : index
      %38 = vector.load %arg5[%c0_9, %c0_10, %c0_11] : memref<2x16x128xf32, #tpu.memory_space<vmem>>, vector<1x16x128xf32>
      %39 = vector.shape_cast %38 : vector<1x16x128xf32> to vector<16x128xf32>
      %cst_12 = arith.constant dense<0.000000e+00> : vector<16x128xf32>
      %40 = tpu.matmul %37, %12, %cst_12 {dimension_numbers = #tpu.dot_dimension_numbers<[1], [0], [0], [1], [0, 0, 1, 1], [], []>} : vector<16x16xf32>, vector<16x128xf32>, vector<16x128xf32> -> vector<16x128xf32>
      %41 = arith.addf %39, %40 : vector<16x128xf32>
      %c0_13 = arith.constant 0 : index
      %c0_14 = arith.constant 0 : index
      %c0_15 = arith.constant 0 : index
      %42 = vector.load %arg5[%c0_13, %c0_14, %c0_15] : memref<2x16x128xf32, #tpu.memory_space<vmem>>, vector<1x16x128xf32>
      %43 = vector.shape_cast %42 : vector<1x16x128xf32> to vector<16x128xf32>
      %44 = vector.shape_cast %41 : vector<16x128xf32> to vector<1x16x128xf32>
      tpu.vector_store %arg5[%c0_13, %c0_14, %c0_15], %44 {strides = array<i32>} : memref<2x16x128xf32, #tpu.memory_space<vmem>>, vector<1x16x128xf32>,
      %c8_i32 = arith.constant 8 : i32
      %45 = vector.broadcast %c8_i32 : i32 to vector<16x16xi32>
      %46 = arith.subi %15, %45 : vector<16x16xi32>
      %47 = arith.cmpi sgt, %18, %46 : vector<16x16xi32>
      %48 = arith.cmpi sle, %18, %15 : vector<16x16xi32>
      %49 = arith.andi %47, %48 : vector<16x16xi1>
      %c0_i32_16 = arith.constant 0 : i32
      %50 = vector.broadcast %c0_i32_16 : i32 to vector<16x16xi32>
      %51 = arith.cmpi eq, %18, %50 : vector<16x16xi32>
      %c7_i32 = arith.constant 7 : i32
      %52 = vector.broadcast %c7_i32 : i32 to vector<16x16xi32>
      %53 = arith.subi %52, %15 : vector<16x16xi32>
      %c0_i32_17 = arith.constant 0 : i32
      %54 = vector.broadcast %c0_i32_17 : i32 to vector<16x16xi32>
      %55 = arith.maxsi %53, %54 : vector<16x16xi32>
      %c0_i32_18 = arith.constant 0 : i32
      %56 = vector.broadcast %c0_i32_18 : i32 to vector<16x16xi32>
      %57 = arith.select %51, %55, %56 : vector<16x16xi1>, vector<16x16xi32>
      %58 = arith.extui %49 : vector<16x16xi1> to vector<16x16xi32>
      %59 = arith.sitofp %58 : vector<16x16xi32> to vector<16x16xf32>
      %60 = arith.sitofp %57 : vector<16x16xi32> to vector<16x16xf32>
      %61 = arith.addf %59, %60 : vector<16x16xf32>
      %cst_19 = arith.constant 1.250000e-01 : f32
      %62 = vector.broadcast %cst_19 : f32 to vector<16x16xf32>
      %63 = arith.mulf %61, %62 : vector<16x16xf32>
      %c1 = arith.constant 1 : index
      %c0_20 = arith.constant 0 : index
      %c0_21 = arith.constant 0 : index
      %64 = vector.load %arg5[%c1, %c0_20, %c0_21] : memref<2x16x128xf32, #tpu.memory_space<vmem>>, vector<1x16x128xf32>
      %65 = vector.shape_cast %64 : vector<1x16x128xf32> to vector<16x128xf32>
      %cst_22 = arith.constant dense<0.000000e+00> : vector<16x128xf32>
      %66 = tpu.matmul %63, %12, %cst_22 {dimension_numbers = #tpu.dot_dimension_numbers<[1], [0], [0], [1], [0, 0, 1, 1], [], []>} : vector<16x16xf32>, vector<16x128xf32>, vector<16x128xf32> -> vector<16x128xf32>
      %67 = arith.addf %65, %66 : vector<16x128xf32>
      %c1_23 = arith.constant 1 : index
      %c0_24 = arith.constant 0 : index
      %c0_25 = arith.constant 0 : index
      %68 = vector.load %arg5[%c1_23, %c0_24, %c0_25] : memref<2x16x128xf32, #tpu.memory_space<vmem>>, vector<1x16x128xf32>
      %69 = vector.shape_cast %68 : vector<1x16x128xf32> to vector<16x128xf32>
      %70 = vector.shape_cast %67 : vector<16x128xf32> to vector<1x16x128xf32>
      tpu.vector_store %arg5[%c1_23, %c0_24, %c0_25], %70 {strides = array<i32>} : memref<2x16x128xf32, #tpu.memory_space<vmem>>, vector<1x16x128xf32>,
    } else {
    }
    %c0_i32_2 = arith.constant 0 : i32
    %6 = arith.cmpi eq, %arg2, %c0_i32_2 : i32
    %7 = arith.extui %6 : i1 to i32
    %c0_i32_3 = arith.constant 0 : i32
    %8 = arith.cmpi ne, %7, %c0_i32_3 : i32
    scf.if %8 {
      %c0 = arith.constant 0 : index
      %c0_4 = arith.constant 0 : index
      %c0_5 = arith.constant 0 : index
      %9 = vector.load %arg5[%c0, %c0_4, %c0_5] : memref<2x16x128xf32, #tpu.memory_space<vmem>>, vector<2x16x128xf32>
      %c0_6 = arith.constant 0 : index
      %c0_7 = arith.constant 0 : index
      %c0_8 = arith.constant 0 : index
      %10 = vector.load %arg4[%c0_6, %c0_7, %c0_8] : memref<2x16x128xf32, #tpu.memory_space<vmem>>, vector<2x16x128xf32>
      tpu.vector_store %arg4[%c0_6, %c0_7, %c0_8], %9 {strides = array<i32>} : memref<2x16x128xf32, #tpu.memory_space<vmem>>, vector<2x16x128xf32>,
    } else {
    }
    return
  }
  func.func @transform_0(%arg0: i32, %arg1: i32, %arg2: i32) -> (i32, i32) {
    %0 = arith.subi %arg0, %arg2 : i32
    %c0_i32 = arith.constant 0 : i32
    %1 = arith.maxsi %0, %c0_i32 : i32
    %c0_i32_0 = arith.constant 0 : i32
    return %1, %arg1 : i32, i32
  }
  func.func @transform_1(%arg0: i32, %arg1: i32, %arg2: i32) -> (i32, i32, i32) {
    %c0_i32 = arith.constant 0 : i32
    %c0_i32_0 = arith.constant 0 : i32
    return %c0_i32, %arg0, %arg1 : i32, i32, i32
  }
}

</mosaic_0001>

<llo_original>
// kernel: tpu_custom_call.1
$region0: #{tpu_custom_call.1}
  #allocation0 [shape = 'u32[]', space=smem, size = 0x4, offset = 0x4, fixed_abs, tag = 'smem constant byte address 0x4 - core index']
  #allocation1 [shape = 'u32[72,128]{1,0:T(1,128)}', space=vmem, size = 0x9000, scoped, tag = 'internal scratch']
  #allocation2 [shape = 'f32[2,16,128]{2,1,0:T(8,128)}', space=vmem, size = 0x4000, scoped, tag = 'scratch operand']
  %s0 = inlined_call_operand.hbm [shape: f32[16,128], index: 0, kind: input, shape index: {}]
  %s1 = inlined_call_operand.hbm [shape: f32[2,16,128], index: 1, kind: output, shape index: {}]
  %s2 = sld [smem:[#allocation0]]
  $region30: #{tpu_custom_call.1} parent=0
    _
  %s4 = ssub.s32 1, %s2
  %s5 = scalar_select 0, %s4, %s2
  $region1: #{tpu_custom_call.1} parent=0
    #allocation3 [shape = 'u8[8192]{0}', space=vmem, size = 0x2000, scoped, tag = 'input window, operand 0, single buffered']
    #allocation4 [shape = 's32[1]{0}', space=sflag, size = 0x4, scoped, tag = 'scoped memory for tpu_custom_call.1']
    #allocation5 [shape = 's32[1]{0}', space=sflag, size = 0x4, scoped, tag = 'scoped memory for tpu_custom_call.1']
    #allocation6 [shape = 'u8[16384]{0}', space=vmem, size = 0x4000, scoped, tag = 'output window, operand 0, single buffered']
    %6 = vsyncpa [#allocation4], 0
    %7 = vsyncpa [#allocation5], 0
    // Predicated region
    $region2: #{tpu_custom_call.1} parent=1 // pred_check
      _
    $region3: #{tpu_custom_call.1} parent=1 // pred_check_branch
      %9 = sbr.rel (0) target = $region5
    $region4: #{tpu_custom_call.1} parent=1 // pred_region
      %s10 = ssub.s32 0, 0
      %p11 = scmp.gt.s32.totalorder %s10, 0
      %s12 = scalar_select %p11, %s10, 0
      %s13 = smul.u32 2, %s12
      %15 = vsyncadd [#allocation4], 0
      %s16 = smul.addr %s13, 8
      %s17 = scalar_lea.hbm %s0, %s16
      %s18 = sshll.u32 %s17, 4
      %s19 = int_to_ptr.hbm [resolvable:$true] %s18
      %s20 = sshll.u32 [#allocation3], 4
      %s21 = int_to_ptr.vmem [resolvable:$true] %s20
      %26 = dma.hbm_to_vmem [thread:$0]  %s19, 256, %s21, [#allocation4], 128, 128, 8
    $region5: #{tpu_custom_call.1} parent=1 // pred_fallthru
      _
    // Predicated region
    $region6: #{tpu_custom_call.1} parent=1 // pred_check
      _
    $region7: #{tpu_custom_call.1} parent=1 // pred_check_branch
      %28 = sbr.rel (0) target = $region9
    $region8: #{tpu_custom_call.1} parent=1 // pred_region
      %30 = dma.done [#allocation4], 256
    $region9: #{tpu_custom_call.1} parent=1 // pred_fallthru
      _
    %s31 = ssub.s32 0, 0
    %p32 = scmp.gt.s32.totalorder %s31, 0
    %s33 = scalar_select %p32, %s31, 0
    %s34 = smul.u32 2, %s33
    %p35 = scmp.eq.s32.totalorder 0, 0
    // Predicated region
    $region10: #{tpu_custom_call.1} parent=1 // pred_check
      %p36 = pneg %p35
    $region11: #{tpu_custom_call.1} parent=1 // pred_check_branch
      %38 = sbr.rel (%p36) target = $region13
    $region12: #{tpu_custom_call.1} parent=1 // pred_region
      %39 = vst [vmem:[#allocation2] sm:$0xff] 0.0
      %40 = vst [vmem:[#allocation2 + $0x8] sm:$0xff] 0.0
      %41 = vst [vmem:[#allocation2 + $0x10] sm:$0xff] 0.0
      %42 = vst [vmem:[#allocation2 + $0x18] sm:$0xff] 0.0
    $region13: #{tpu_custom_call.1} parent=1 // pred_fallthru
      _
    %p43 = scmp.le.s32.totalorder 0, 0
    // Predicated region
    $region14: #{tpu_custom_call.1} parent=1 // pred_check
      %p44 = pneg %p43
    $region15: #{tpu_custom_call.1} parent=1 // pred_check_branch
      %46 = sbr.rel (%p44) target = $region17
    $region16: #{tpu_custom_call.1} parent=1 // pred_region
      %s47 = smul.u32 0, 16
      %s48 = ssub.s32 0, 0
      %s49 = smul.u32 %s48, 16
      %v50 = vld [vmem:[#allocation3] sm:$0xff]
      %v51 = vld [vmem:[#allocation3 + $0x8] sm:$0xff]
      %v52 = vlaneseq
      %v53 = vshrl.u32 %v52, 7
      %v54 = vadd.s32 %v53, 8
      %v55 = vstv %s47
      %v56 = vadd.s32 %v55, %v53
      %v57 = vadd.s32 %v55, %v54
      %v58 = vlaneseq
      %v59 = vand.u32 %v58, 127
      %v60 = vstv %s49
      %v61 = vadd.s32 %v60, %v59
      %v62 = vsub.s32 %v56, 2
      %v63 = vsub.s32 %v57, 2
      %vm64 = vcmp.gt.s32.totalorder %v61, %v62
      %vm65 = vcmp.gt.s32.totalorder %v61, %v63
      %vm66 = vcmp.le.s32.totalorder %v61, %v56
      %vm67 = vcmp.le.s32.totalorder %v61, %v57
      %vm68 = vmand %vm64, %vm66
      %vm69 = vmand %vm65, %vm67
      %vm70 = vcmp.eq.s32.totalorder %v61, 0
      %v71 = vsub.s32 1, %v56
      %v72 = vsub.s32 1, %v57
      %vm73 = vcmp.gt.s32.totalorder %v71, 0
      %v74 = vsel %vm73, %v71, 0
      %vm75 = vcmp.gt.s32.totalorder %v72, 0
      %v76 = vsel %vm75, %v72, 0
      %v77 = vsel %vm70, %v74, 0
      %v78 = vsel %vm70, %v76, 0
      %v79 = vsel %vm68, 1, 0
      %v80 = vsel %vm69, 1, 0
      %v81 = vcvt.s32.f32 %v79
      %v82 = vcvt.s32.f32 %v80
      %v83 = vcvt.s32.f32 %v77
      %v84 = vcvt.s32.f32 %v78
      %v85 = vadd.f32 %v81, %v83
      %v86 = vadd.f32 %v82, %v84
      %v87 = vmul.f32 %v85, 0.5
      %v88 = vmul.f32 %v86, 0.5
      %v89 = vld [vmem:[#allocation2] sm:$0xff]
      %v90 = vld [vmem:[#allocation2 + $0x8] sm:$0xff]
      %vm91 = vcmask 130048
      %v93 = vsel %vm91, %v87, 0
      %v96 = vsel %vm91, %v88, 0
      %98 = vmatpush.msra.mxu0 0.0
      %99 = vmatpush.msra.mxu0 0.0
      %100 = vmatpush.msra.mxu0 0.0
      %101 = vmatpush.msra.mxu0 0.0
      %102 = vmatpush.msra.mxu0 0.0
      %103 = vmatpush.msra.mxu0 0.0
      %104 = vmatpush.msra.mxu0 0.0
      %105 = vmatpush.msra.mxu0 0.0
      %106 = vmatpush.msra.mxu0 0.0
      %107 = vmatpush.msra.mxu0 0.0
      %108 = vmatpush.msra.mxu0 0.0
      %109 = vmatpush.msra.mxu0 0.0
      %110 = vmatpush.msra.mxu0 0.0
      %111 = vmatpush.msra.mxu0 0.0
      %112 = vmatpush.msra.mxu0 %v51
      %113 = vmatpush.msra.mxu0 %v50
      %114 = vmatmul.f32.gmra.mxu0 %v93
      %v115 = vpop.f32.mrf.mxu0
      %v116 = vadd.f32 0.0, %v115
      %117 = vmatmul.f32.gmra.mxu0 %v96
      %v118 = vpop.f32.mrf.mxu0
      %v119 = vadd.f32 0.0, %v118
      %120 = vdwg.mxu0
      %v121 = vadd.f32 %v89, %v116
      %v122 = vadd.f32 %v90, %v119
      %123 = vst [vmem:[#allocation2] sm:$0xff] %v121
      %124 = vst [vmem:[#allocation2 + $0x8] sm:$0xff] %v122
      %v125 = vsub.s32 %v56, 8
      %v126 = vsub.s32 %v57, 8
      %vm127 = vcmp.gt.s32.totalorder %v61, %v125
      %vm128 = vcmp.gt.s32.totalorder %v61, %v126
      %vm129 = vmand %vm127, %vm66
      %vm130 = vmand %vm128, %vm67
      %v131 = vsub.s32 7, %v56
      %v132 = vsub.s32 7, %v57
      %vm133 = vcmp.gt.s32.totalorder %v131, 0
      %v134 = vsel %vm133, %v131, 0
      %vm135 = vcmp.gt.s32.totalorder %v132, 0
      %v136 = vsel %vm135, %v132, 0
      %v137 = vsel %vm70, %v134, 0
      %v138 = vsel %vm70, %v136, 0
      %v139 = vsel %vm129, 1, 0
      %v140 = vsel %vm130, 1, 0
      %v141 = vcvt.s32.f32 %v139
      %v142 = vcvt.s32.f32 %v140
      %v143 = vcvt.s32.f32 %v137
      %v144 = vcvt.s32.f32 %v138
      %v145 = vadd.f32 %v141, %v143
      %v146 = vadd.f32 %v142, %v144
      %v147 = vmul.f32 %v145, 0.125
      %v148 = vmul.f32 %v146, 0.125
      %s149 = scalar_lea.vmem [#allocation2], 16
      %v150 = vld [vmem:[%s149] sm:$0xff]
      %v151 = vld [vmem:[%s149 + $0x8] sm:$0xff]
      %v153 = vsel %vm91, %v147, 0
      %v156 = vsel %vm91, %v148, 0
      %158 = vmatpush.msra.mxu0 0.0
      %159 = vmatpush.msra.mxu0 0.0
      %160 = vmatpush.msra.mxu0 0.0
      %161 = vmatpush.msra.mxu0 0.0
      %162 = vmatpush.msra.mxu0 0.0
      %163 = vmatpush.msra.mxu0 0.0
      %164 = vmatpush.msra.mxu0 0.0
      %165 = vmatpush.msra.mxu0 0.0
      %166 = vmatpush.msra.mxu0 0.0
      %167 = vmatpush.msra.mxu0 0.0
      %168 = vmatpush.msra.mxu0 0.0
      %169 = vmatpush.msra.mxu0 0.0
      %170 = vmatpush.msra.mxu0 0.0
      %171 = vmatpush.msra.mxu0 0.0
      %172 = vmatpush.msra.mxu0 %v51
      %173 = vmatpush.msra.mxu0 %v50
      %174 = vmatmul.f32.gmra.mxu0 %v153
      %v175 = vpop.f32.mrf.mxu0
      %v176 = vadd.f32 0.0, %v175
      %177 = vmatmul.f32.gmra.mxu0 %v156
      %v178 = vpop.f32.mrf.mxu0
      %v179 = vadd.f32 0.0, %v178
      %180 = vdwg.mxu0
      %v181 = vadd.f32 %v150, %v176
      %v182 = vadd.f32 %v151, %v179
      %183 = vst [vmem:[%s149] sm:$0xff] %v181
      %184 = vst [vmem:[%s149 + $0x8] sm:$0xff] %v182
    $region17: #{tpu_custom_call.1} parent=1 // pred_fallthru
      _
    // Predicated region
    $region18: #{tpu_custom_call.1} parent=1 // pred_check
      %p185 = pneg %p35
    $region19: #{tpu_custom_call.1} parent=1 // pred_check_branch
      %187 = sbr.rel (%p185) target = $region21
    $region20: #{tpu_custom_call.1} parent=1 // pred_region
      %v188 = vld [vmem:[#allocation2] sm:$0xff]
      %v189 = vld [vmem:[#allocation2 + $0x8] sm:$0xff]
      %v190 = vld [vmem:[#allocation2 + $0x10] sm:$0xff]
      %v191 = vld [vmem:[#allocation2 + $0x18] sm:$0xff]
      %192 = vst [vmem:[#allocation6] sm:$0xff] %v188
      %193 = vst [vmem:[#allocation6 + $0x8] sm:$0xff] %v189
      %194 = vst [vmem:[#allocation6 + $0x10] sm:$0xff] %v190
      %195 = vst [vmem:[#allocation6 + $0x18] sm:$0xff] %v191
    $region21: #{tpu_custom_call.1} parent=1 // pred_fallthru
      _
    // Predicated region
    $region22: #{tpu_custom_call.1} parent=1 // pred_check
      _
    $region23: #{tpu_custom_call.1} parent=1 // pred_check_branch
      %197 = sbr.rel (0) target = $region25
    $region24: #{tpu_custom_call.1} parent=1 // pred_region
      %199 = vsyncadd [#allocation5], 0
      %s200 = sshll.u32 [#allocation6], 4
      %s201 = int_to_ptr.vmem [resolvable:$true] %s200
      %s202 = sshll.u32 %s1, 4
      %s203 = int_to_ptr.hbm [resolvable:$true] %s202
      %208 = dma.vmem_to_hbm [thread:$0]  %s201, 512, %s203, [#allocation5], 128, 128, 8
    $region25: #{tpu_custom_call.1} parent=1 // pred_fallthru
      _
    // Predicated region
    $region26: #{tpu_custom_call.1} parent=1 // pred_check
      _
    $region27: #{tpu_custom_call.1} parent=1 // pred_check_branch
      %210 = sbr.rel (0) target = $region29
    $region28: #{tpu_custom_call.1} parent=1 // pred_region
      %212 = dma.done [#allocation5], 512
    $region29: #{tpu_custom_call.1} parent=1 // pred_fallthru
      _
    %213 = vsyncpa [#allocation4], 1
    %214 = vsyncpa [#allocation5], 1

</llo_original>
